<compile_context>
chip_gen: v7x
topology: tpu7x:2x2x1
jax: 0.10.0
libtpu: 0.0.40
codegen_flags: <defaults>
</compile_context>

<pallas_src>
import functools

import jax
import jax.numpy as jnp
from jax.experimental import pallas as pl
from jax.experimental.pallas import tpu as pltpu

NEG_SLOPE = 0.2  # LeakyReLU negative_slope (module default)


# --------------------------------------------------------------------------------------
# Attention + aggregation kernels
# --------------------------------------------------------------------------------------
def _attn_kernel_with_a(feat_ref, el_ref, er_ref, adj_ref, rst_ref, a_ref):
    # feat_ref: (H, Np, D) resident; el_ref: (1, 1, Np); er_ref: (1, T, 1); adj_ref: (T, Np)
    h = pl.program_id(1)
    feat_h = feat_ref[h]                                   # (Np, D) projected src features

    # e[dst, src] = LeakyReLU(el[src] + er[dst])           (fn.u_add_v + leaky_relu)
    e = er_ref[0] + el_ref[0]                              # (T, Np)
    e = jnp.maximum(e, NEG_SLOPE * e)                      # LeakyReLU

    # edge_softmax over incoming edges of each dst row; mask by multiply (exact zeros).
    m = jnp.max(e, axis=-1, keepdims=True)                 # unmasked row max (cancels out)
    p = jnp.exp(e - m) * adj_ref[...]
    s = jnp.sum(p, axis=-1, keepdims=True)
    a = p * pl.reciprocal(s, approx=False)                 # (T, Np)

    # update_all(u_mul_e, sum)  ==  a @ feat_src
    rst_ref[0] = jnp.dot(a, feat_h, preferred_element_type=jnp.float32)   # (T, D)
    a_ref[0] = a.astype(a_ref.dtype)


def _make_rst_only_kernel(num_heads):
    def kernel(feat_ref, el_ref, er_ref, adj_ref, out_ref):
        # feat_ref: (H, Np, D); el_ref: (H, 1, Np); er_ref: (H, T, 1); adj_ref: (T, Np)
        adj = adj_ref[...]
        parts = []
        for h in range(num_heads):                         # static unrolled head loop
            e = er_ref[h] + el_ref[h]                      # (T, 1) + (1, Np) -> (T, Np)
            e = jnp.maximum(e, NEG_SLOPE * e)
            m = jnp.max(e, axis=-1, keepdims=True)
            p = jnp.exp(e - m) * adj
            s = jnp.sum(p, axis=-1, keepdims=True)
            a = p * pl.reciprocal(s, approx=False)
            parts.append(jnp.dot(a, feat_ref[h], preferred_element_type=jnp.float32))
        out_ref[...] = jnp.concatenate(parts, axis=-1)     # lane-dense (T, H*D) store
    return kernel


# --------------------------------------------------------------------------------------
# VMEM budgeting / tile selection
# --------------------------------------------------------------------------------------
def _vmem_capacity_bytes():
    try:
        info = pltpu.get_tpu_info()
        for name in ("vmem_capacity_bytes", "vmem_bytes"):
            cap = getattr(info, name, None)
            if cap:
                return int(cap)
    except Exception:
        pass
    return 64 * 1024 * 1024  # conservative default (v7x per-TC VMEM)


def _choose_dst_tile(n_pad, d, num_heads, with_attn, a_itemsize, budget, max_dst_tile=None):
    """Largest multiple-of-128 divisor of n_pad whose working set fits the budget."""
    f32 = 4
    # bytes that scale with each dst row of the tile
    per_row = 2 * n_pad * f32                 # adj tile (double buffered)
    per_row += 4 * n_pad * f32                # live (T, N) softmax temporaries (e, p, a, ...)
    if with_attn:
        per_row += 2 * n_pad * a_itemsize     # `a` writeback tile (double buffered)
        per_row += 2 * d * f32                # (1, T, D) rst tile
    else:
        per_row += 2 * num_heads * d * f32    # (T, H*D) rst tile
    # bytes independent of the tile size
    fixed = 2 * num_heads * n_pad * d * f32   # resident projected-feature block
    fixed += 4 * num_heads * n_pad * f32      # el / er blocks (generous)
    fixed += 2 << 20                          # slack
    t_cap = max(128, (budget - fixed) // per_row)
    if max_dst_tile is not None:
        t_cap = min(t_cap, int(max_dst_tile))
    t_cap = min(t_cap, n_pad)
    t = max(128, (t_cap // 128) * 128)
    while t > 128 and n_pad % t != 0:
        t -= 128
    return t                                  # n_pad is a multiple of 128, so 128 always divides


# --------------------------------------------------------------------------------------
# Wrapper
# --------------------------------------------------------------------------------------
@functools.partial(jax.jit, static_argnames=("with_attn", "a_dtype", "max_dst_tile"))
def pre_gat_conv_wo(x, adj, w, attn_l, attn_r, *, with_attn=True,
                    a_dtype=jnp.float32, max_dst_tile=None):
    n, f_in = x.shape
    num_heads, _, d = w.shape

    # ---- pad the node dimension to a multiple of 128 (lane / MXU friendly tiles) ----
    n_pad = max(128, -(-n // 128) * 128)
    if n_pad != n:
        x = jnp.pad(x, ((0, n_pad - n), (0, 0)))
        adj = jnp.pad(adj, ((0, n_pad - n), (0, n_pad - n)))
        pad_idx = jnp.arange(n, n_pad)
        adj = adj.at[pad_idx, pad_idx].set(1.0)   # self-loops on padded rows (no 0-sum rows)

    # ---- projection + el/er precompute: one lane-dense GEMM (plain XLA per review) ----
    w_flat = jnp.transpose(w, (1, 0, 2)).reshape(f_in, num_heads * d)          # (F, H*D)
    feat_flat = jnp.dot(x, w_flat, preferred_element_type=jnp.float32)         # (Np, H*D)
    feat = jnp.transpose(feat_flat.reshape(n_pad, num_heads, d), (1, 0, 2))    # (H, Np, D)
    el = jnp.einsum('hnd,hd->hn', feat, attn_l[:, 0, :])[:, None, :]           # (H, 1, Np)
    er = jnp.einsum('hnd,hd->hn', feat, attn_r[:, 0, :])[:, :, None]           # (H, Np, 1)

    # ---- generation-aware VMEM budget & dst tile ----
    cap = _vmem_capacity_bytes()
    if cap <= (64 << 20):                      # v7x: 64 MiB per TensorCore
        budget = min(40 << 20, max(24 << 20, cap - (16 << 20)))
    else:                                      # v5e / v6e: 128 MiB
        budget = int(cap * 0.8)
    vmem_limit = int(min(cap, budget + (16 << 20)))
    a_itemsize = jnp.dtype(a_dtype).itemsize
    t = _choose_dst_tile(n_pad, d, num_heads, with_attn, a_itemsize, budget, max_dst_tile)
    n_tiles = n_pad // t

    if with_attn:
        rst_h, a_h = pl.pallas_call(
            _attn_kernel_with_a,
            out_shape=(jax.ShapeDtypeStruct((num_heads, n_pad, d), jnp.float32),
                       jax.ShapeDtypeStruct((num_heads, n_pad, n_pad), a_dtype)),
            grid_spec=pltpu.PrefetchScalarGridSpec(
                num_scalar_prefetch=0,
                grid=(n_tiles, num_heads),
                in_specs=[
                    pl.BlockSpec((num_heads, n_pad, d), lambda i, h: (0, 0, 0)),  # feat resident
                    pl.BlockSpec((1, 1, n_pad), lambda i, h: (h, 0, 0)),          # el[h]
                    pl.BlockSpec((1, t, 1), lambda i, h: (h, i, 0)),              # er[h] dst tile
                    pl.BlockSpec((t, n_pad), lambda i, h: (i, 0)),                # adj (reused over h)
                ],
                out_specs=(pl.BlockSpec((1, t, d), lambda i, h: (h, i, 0)),
                           pl.BlockSpec((1, t, n_pad), lambda i, h: (h, i, 0))),
            ),
            compiler_params=pltpu.CompilerParams(
                dimension_semantics=("parallel", "arbitrary"),
                vmem_limit_bytes=vmem_limit),
        )(feat, el, er, adj)

        rst = jnp.transpose(rst_h, (1, 0, 2))            # (Np, H, D)
        if n_pad != n:
            rst = rst[:n]
            a_h = a_h[:, :n, :n]
        return rst, a_h

    out = pl.pallas_call(
        _make_rst_only_kernel(num_heads),
        out_shape=jax.ShapeDtypeStruct((n_pad, num_heads * d), jnp.float32),
        grid_spec=pltpu.PrefetchScalarGridSpec(
            num_scalar_prefetch=0,
            grid=(n_tiles,),
            in_specs=[
                pl.BlockSpec((num_heads, n_pad, d), lambda i: (0, 0, 0)),   # feat resident
                pl.BlockSpec((num_heads, 1, n_pad), lambda i: (0, 0, 0)),   # el (all heads)
                pl.BlockSpec((num_heads, t, 1), lambda i: (0, i, 0)),       # er dst tile
                pl.BlockSpec((t, n_pad), lambda i: (i, 0)),                 # adj dst tile
            ],
            out_specs=pl.BlockSpec((t, num_heads * d), lambda i: (i, 0)),   # lane-dense rst
        ),
        compiler_params=pltpu.CompilerParams(
            dimension_semantics=("parallel",),
            vmem_limit_bytes=vmem_limit),
    )(feat, el, er, adj)
    return out[:n].reshape(n, num_heads, d)


# --------------------------------------------------------------------------------------
# Pure-JAX reference of the same dense-graph GAT forward
# --------------------------------------------------------------------------------------
def _reference(x, adj, w, attn_l, attn_r):
    feat = jnp.einsum('nf,hfd->hnd', x, w)                      # (H, N, D)
    el = jnp.einsum('hnd,hd->hn', feat, attn_l[:, 0, :])        # (H, N)   per src
    er = jnp.einsum('hnd,hd->hn', feat, attn_r[:, 0, :])        # (H, N)   per dst
    e = er[:, :, None] + el[:, None, :]                         # (H, dst, src)
    e = jnp.maximum(e, NEG_SLOPE * e)
    e = jnp.where(adj[None] > 0, e, -1e30)
    e = e - jnp.max(e, axis=-1, keepdims=True)
    p = jnp.exp(e)
    a = p / jnp.sum(p, axis=-1, keepdims=True)                  # (H, dst, src)
    rst = jnp.einsum('hij,hjd->ihd', a, feat)                   # (N, H, D)
    return rst, a


if __name__ == "__main__":
    # Small deterministic problem that still exercises dst tiling (grid (2, H)).
    N, F_IN, H, D = 256, 32, 4, 16
    key = jax.random.PRNGKey(0)
    k_x, k_w, k_al, k_ar, k_adj = jax.random.split(key, 5)

    x = jax.random.normal(k_x, (N, F_IN), dtype=jnp.float32)

    # Deterministic "xavier_normal_(gain=sqrt(2))"-style init (values synthetic).
    gain = jnp.sqrt(2.0)
    std_fc = gain * jnp.sqrt(2.0 / (F_IN + H * D))
    fc_weight = std_fc * jax.random.normal(k_w, (H * D, F_IN), dtype=jnp.float32)  # torch (out, in)
    w = jnp.transpose(fc_weight.T.reshape(F_IN, H, D), (1, 0, 2))                  # (H, F_in, D)

    std_attn = gain * jnp.sqrt(2.0 / (H + D))
    attn_l = std_attn * jax.random.normal(k_al, (H, 1, D), dtype=jnp.float32)
    attn_r = std_attn * jax.random.normal(k_ar, (H, 1, D), dtype=jnp.float32)

    # Random dense adjacency with guaranteed self-loops (no zero-in-degree nodes).
    adj_rand = (jax.random.uniform(k_adj, (N, N)) < 0.3).astype(jnp.float32)
    adj = jnp.maximum(adj_rand, jnp.eye(N, dtype=jnp.float32))

    rst_ref, a_ref = _reference(x, adj, w, attn_l, attn_r)

    # Full forward (rst + dense f32 attention), forcing a 128-row dst tile (n_tiles=2).
    rst, a = pre_gat_conv_wo(x, adj, w, attn_l, attn_r, max_dst_tile=128)
    jax.block_until_ready((rst, a))
    assert rst.shape == (N, H, D) and a.shape == (H, N, N)
    assert jnp.allclose(rst, rst_ref, rtol=1e-4, atol=1e-5)
    assert jnp.allclose(a, a_ref, rtol=1e-4, atol=1e-5)

    # bf16 storage for the dense attention stream (HBM-write-bound path); math stays f32.
    rst_b, a_b = pre_gat_conv_wo(x, adj, w, attn_l, attn_r,
                                 a_dtype=jnp.bfloat16, max_dst_tile=128)
    jax.block_until_ready((rst_b, a_b))
    assert jnp.allclose(rst_b, rst_ref, rtol=1e-4, atol=1e-5)
    assert jnp.allclose(a_b.astype(jnp.float32), a_ref, rtol=2e-2, atol=5e-3)

    # rst-only fast path: single dst grid axis, lane-dense (T, H*D) stores.
    rst_only = pre_gat_conv_wo(x, adj, w, attn_l, attn_r, with_attn=False, max_dst_tile=128)
    jax.block_until_ready(rst_only)
    assert jnp.allclose(rst_only, rst_ref, rtol=1e-4, atol=1e-5)

    # Non-multiple-of-128 node count -> exercises internal padding path.
    N2 = 200
    x2 = x[:N2]
    adj2 = jnp.maximum(adj[:N2, :N2], jnp.eye(N2, dtype=jnp.float32))
    rst2_ref, a2_ref = _reference(x2, adj2, w, attn_l, attn_r)
    rst2, a2 = pre_gat_conv_wo(x2, adj2, w, attn_l, attn_r)
    jax.block_until_ready((rst2, a2))
    assert rst2.shape == (N2, H, D) and a2.shape == (H, N2, N2)
    assert jnp.allclose(rst2, rst2_ref, rtol=1e-4, atol=1e-5)
    assert jnp.allclose(a2, a2_ref, rtol=1e-4, atol=1e-5)

    print("KERNEL_OK")
</pallas_src>

<mosaic_0001>
module attributes {stable_mosaic.version = 11 : i64} {
  func.func @_attn_kernel_with_a(%arg0: i32, %arg1: i32, %arg2: memref<4x256x16xf32, #tpu.memory_space<vmem>>, %arg3: memref<1x1x256xf32, #tpu.memory_space<vmem>>, %arg4: memref<1x128x1xf32, #tpu.memory_space<vmem>>, %arg5: memref<128x256xf32, #tpu.memory_space<vmem>>, %arg6: memref<1x128x16xf32, #tpu.memory_space<vmem>>, %arg7: memref<1x128x256xf32, #tpu.memory_space<vmem>>) attributes {dimension_semantics = [#tpu.dimension_semantics<parallel>, #tpu.dimension_semantics<arbitrary>], iteration_bounds = array<i64: 2, 4>, scalar_prefetch = 0 : i64, scratch_operands = 0 : i64, tpu.core_type = #tpu.core_type<tc>, window_params = [{pipeline_mode = #tpu.pipeline_mode<synchronous>, transform_indices = @transform_0, window_bounds = array<i64: 4, 256, 16>}, {transform_indices = @transform_1, window_bounds = array<i64: 1, 1, 256>}, {transform_indices = @transform_2, window_bounds = array<i64: 1, 128, 1>}, {transform_indices = @transform_3, window_bounds = array<i64: 128, 256>}, {transform_indices = @transform_4, window_bounds = array<i64: 1, 128, 16>}, {transform_indices = @transform_5, window_bounds = array<i64: 1, 128, 256>}]} {
    %0 = arith.index_cast %arg1 : i32 to index
    %c0 = arith.constant 0 : index
    %c0_0 = arith.constant 0 : index
    %1 = vector.load %arg2[%0, %c0, %c0_0] : memref<4x256x16xf32, #tpu.memory_space<vmem>>, vector<1x256x16xf32>
    %2 = vector.shape_cast %1 : vector<1x256x16xf32> to vector<256x16xf32>
    %c0_1 = arith.constant 0 : index
    %c0_2 = arith.constant 0 : index
    %c0_3 = arith.constant 0 : index
    %3 = vector.load %arg4[%c0_1, %c0_2, %c0_3] : memref<1x128x1xf32, #tpu.memory_space<vmem>>, vector<1x128x1xf32>
    %4 = vector.shape_cast %3 : vector<1x128x1xf32> to vector<128x1xf32>
    %c0_4 = arith.constant 0 : index
    %c0_5 = arith.constant 0 : index
    %c0_6 = arith.constant 0 : index
    %5 = vector.load %arg3[%c0_4, %c0_5, %c0_6] : memref<1x1x256xf32, #tpu.memory_space<vmem>>, vector<1x1x256xf32>
    %6 = vector.shape_cast %5 : vector<1x1x256xf32> to vector<1x256xf32>
    %7 = vector.broadcast %4 : vector<128x1xf32> to vector<128x256xf32>
    %8 = vector.broadcast %6 : vector<1x256xf32> to vector<128x256xf32>
    %9 = arith.addf %7, %8 : vector<128x256xf32>
    %cst = arith.constant 2.000000e-01 : f32
    %10 = vector.broadcast %cst : f32 to vector<128x256xf32>
    %11 = arith.mulf %10, %9 : vector<128x256xf32>
    %12 = arith.maximumf %9, %11 : vector<128x256xf32>
    %cst_7 = arith.constant dense<0xFF800000> : vector<128xf32>
    %13 = vector.multi_reduction <maximumf>, %12, %cst_7 [1] : vector<128x256xf32> to vector<128xf32>
    %14 = vector.shape_cast %13 : vector<128xf32> to vector<128x1xf32>
    %15 = vector.broadcast %14 : vector<128x1xf32> to vector<128x256xf32>
    %16 = arith.subf %12, %15 : vector<128x256xf32>
    %17 = math.exp %16 : vector<128x256xf32>
    %c0_8 = arith.constant 0 : index
    %c0_9 = arith.constant 0 : index
    %18 = vector.load %arg5[%c0_8, %c0_9] : memref<128x256xf32, #tpu.memory_space<vmem>>, vector<128x256xf32>
    %19 = arith.mulf %17, %18 : vector<128x256xf32>
    %cst_10 = arith.constant dense<0.000000e+00> : vector<128xf32>
    %20 = vector.multi_reduction <add>, %19, %cst_10 [1] : vector<128x256xf32> to vector<128xf32>
    %21 = vector.shape_cast %20 : vector<128xf32> to vector<128x1xf32>
    %22 = tpu.reciprocal %21 : vector<128x1xf32> -> vector<128x1xf32>
    %23 = vector.broadcast %22 : vector<128x1xf32> to vector<128x256xf32>
    %24 = arith.mulf %19, %23 : vector<128x256xf32>
    %cst_11 = arith.constant dense<0.000000e+00> : vector<128x16xf32>
    %25 = tpu.matmul %24, %2, %cst_11 {dimension_numbers = #tpu.dot_dimension_numbers<[1], [0], [0], [1], [0, 0, 1, 1], [], []>} : vector<128x256xf32>, vector<256x16xf32>, vector<128x16xf32> -> vector<128x16xf32>
    %c0_12 = arith.constant 0 : index
    %c0_13 = arith.constant 0 : index
    %c0_14 = arith.constant 0 : index
    %26 = vector.load %arg6[%c0_12, %c0_13, %c0_14] : memref<1x128x16xf32, #tpu.memory_space<vmem>>, vector<1x128x16xf32>
    %27 = vector.shape_cast %26 : vector<1x128x16xf32> to vector<128x16xf32>
    %28 = vector.shape_cast %25 : vector<128x16xf32> to vector<1x128x16xf32>
    tpu.vector_store %arg6[%c0_12, %c0_13, %c0_14], %28 {strides = array<i32>} : memref<1x128x16xf32, #tpu.memory_space<vmem>>, vector<1x128x16xf32>,
    %c0_15 = arith.constant 0 : index
    %c0_16 = arith.constant 0 : index
    %c0_17 = arith.constant 0 : index
    %29 = vector.load %arg7[%c0_15, %c0_16, %c0_17] : memref<1x128x256xf32, #tpu.memory_space<vmem>>, vector<1x128x256xf32>
    %30 = vector.shape_cast %29 : vector<1x128x256xf32> to vector<128x256xf32>
    %31 = vector.shape_cast %24 : vector<128x256xf32> to vector<1x128x256xf32>
    tpu.vector_store %arg7[%c0_15, %c0_16, %c0_17], %31 {strides = array<i32>} : memref<1x128x256xf32, #tpu.memory_space<vmem>>, vector<1x128x256xf32>,
    return
  }
  func.func @transform_0(%arg0: i32, %arg1: i32) -> (i32, i32, i32) {
    %c0_i32 = arith.constant 0 : i32
    %c0_i32_0 = arith.constant 0 : i32
    %c0_i32_1 = arith.constant 0 : i32
    %c0_i32_2 = arith.constant 0 : i32
    return %c0_i32, %c0_i32_0, %c0_i32_1 : i32, i32, i32
  }
  func.func @transform_1(%arg0: i32, %arg1: i32) -> (i32, i32, i32) {
    %c0_i32 = arith.constant 0 : i32
    %c0_i32_0 = arith.constant 0 : i32
    %c0_i32_1 = arith.constant 0 : i32
    return %arg1, %c0_i32, %c0_i32_0 : i32, i32, i32
  }
  func.func @transform_2(%arg0: i32, %arg1: i32) -> (i32, i32, i32) {
    %c0_i32 = arith.constant 0 : i32
    %c0_i32_0 = arith.constant 0 : i32
    return %arg1, %arg0, %c0_i32 : i32, i32, i32
  }
  func.func @transform_3(%arg0: i32, %arg1: i32) -> (i32, i32) {
    %c0_i32 = arith.constant 0 : i32
    %c0_i32_0 = arith.constant 0 : i32
    return %arg0, %c0_i32 : i32, i32
  }
  func.func @transform_4(%arg0: i32, %arg1: i32) -> (i32, i32, i32) {
    %c0_i32 = arith.constant 0 : i32
    %c0_i32_0 = arith.constant 0 : i32
    return %arg1, %arg0, %c0_i32 : i32, i32, i32
  }
  func.func @transform_5(%arg0: i32, %arg1: i32) -> (i32, i32, i32) {
    %c0_i32 = arith.constant 0 : i32
    %c0_i32_0 = arith.constant 0 : i32
    return %arg1, %arg0, %c0_i32 : i32, i32, i32
  }
}

</mosaic_0001>

<llo_original>
// kernel: pre_gat_conv_wo.1
$region0: #{pre_gat_conv_wo.1}
  #allocation0 [shape = 'u32[]', space=smem, size = 0x4, offset = 0x4, fixed_abs, tag = 'smem constant byte address 0x4 - core index']
  #allocation1 [shape = 'u32[144,128]{1,0:T(1,128)}', space=vmem, size = 0x12000, scoped, tag = 'internal scratch']
  %s0 = inlined_call_operand.vmem [shape: f32[4,256,16], index: 0, kind: input, shape index: {}]
  %s1 = inlined_call_operand.vmem [shape: f32[4,1,256], index: 1, kind: input, shape index: {}]
  %s2 = inlined_call_operand.vmem [shape: f32[4,256,1], index: 2, kind: input, shape index: {}]
  %s3 = inlined_call_operand.vmem [shape: f32[256,256], index: 3, kind: input, shape index: {}]
  %s4 = inlined_call_operand.vmem [shape: f32[4,256,16], index: 4, kind: output, shape index: {0}]
  %s5 = inlined_call_operand.hbm [shape: f32[4,256,256], index: 5, kind: output, shape index: {1}]
  %6 = xla_tuple %s4, %s5
  %s7 = sld [smem:[#allocation0]]
  $region57: #{pre_gat_conv_wo.1} parent=0
    _
  %s9 = ssub.s32 1, %s7
  %s10 = scalar_select 0, %s9, %s7
  $region1: #{pre_gat_conv_wo.1} parent=0
    #allocation2 [shape = 'u8[262144]{0}', space=vmem, size = 0x40000, scoped, tag = 'output window, operand 1']
    #allocation3 [shape = 's32[2]{0}', space=sflag, size = 0x8, scoped, tag = 'scoped memory for pre_gat_conv_wo.1']
    %11 = vsyncpa [#allocation3], 0
    %s12 = scalar_lea.sflag [#allocation3], 1
    %13 = vsyncpa %s12, 0
    loop: start=0, step=1, limit=10
    $region2: #{pre_gat_conv_wo.1} parent=1 // loop_pre_header
      _
    $region3: #{pre_gat_conv_wo.1} parent=1 // loop_header
      %s15 = sphi 0, %s19
      %p16 = scmp.ge.s32.totalorder %s15, 10
      %s22 = sphi 0, %s34
      %s23 = sphi 0, %s30
      %s24 = sphi 0, %s22
      %s25 = sphi 0, %s23
      %s26 = sphi 0, %s24
      %s27 = sphi 0, %s25
      %s35 = sphi 0, %s35
      %s37 = sphi 0, %s35
      %s38 = sphi 0, %s37
      %s52 = sphi 0, %s38
      %s58 = sphi 0, %s60
      %s61 = sphi 0, %s58
      %s62 = sphi 0, %s61
      %s78 = sphi 0, %s62
      %s86 = sphi 0, %s88
      %s89 = sphi 0, %s86
      %s90 = sphi 0, %s89
      %s106 = sphi 0, %s90
      %s112 = sphi 0, %s114
      %s115 = sphi 0, %s112
      %s116 = sphi 0, %s115
      %s132 = sphi 0, %s116
      %s140 = sphi 0, %s142
      %s143 = sphi 0, %s140
      %s144 = sphi 0, %s143
      %s160 = sphi 0, %s144
      %s168 = sphi 0, %s170
      %s171 = sphi 0, %s168
      %s172 = sphi 0, %s171
      %s188 = sphi 0, %s172
    $region4: #{pre_gat_conv_wo.1} parent=1 // loop_header_branch
      %18 = sbr.rel (%p16) target = $region8
    $region5: #{pre_gat_conv_wo.1} parent=1 // loop_body
      %s20 = ssub.s32 %s15, 1
      %s21 = ssub.s32 %s15, 2
      %s28 = sadd.s32 1, %s23
      %p29 = scmp.ge.s32.totalorder %s28, 4
      %s30 = scalar_select %p29, 0, %s28
      %s31 = sadd.s32 1, %s22
      %s32 = scalar_select %p29, %s31, %s22
      %p33 = scmp.ge.s32.totalorder %s32, 2
      %s34 = scalar_select %p33, 0, %s32
      %s36 = sadd.s32 %s35, 1
      %p39 = scmp.eq.s32.totalorder %s15, 7
      %p40 = scmp.ne.s32.totalorder %s35, %s37
      %p41 = scmp.eq.s32.totalorder %s15, 0
      %p42 = por %p40, %p41
      %p43 = scmp.ne.s32.totalorder %s35, %s37
      %p44 = scmp.eq.s32.totalorder %s20, 7
      %p45 = por %p43, %p44
      %p46 = scmp.ne.s32.totalorder %s37, %s38
      %p47 = scmp.eq.s32.totalorder %s20, 0
      %p48 = por %p46, %p47
      %p49 = scmp.ne.s32.totalorder %s37, %s38
      %p50 = scmp.eq.s32.totalorder %s21, 7
      %p51 = por %p49, %p50
      %p53 = scmp.ne.s32.totalorder %s38, %s52
      %p54 = scmp.eq.s32.totalorder %s21, 0
      %p55 = por %p53, %p54
      %s56 = ssub.s32 %s23, %s30
      %p57 = scmp.eq.s32.totalorder %s56, 0
      %s59 = sadd.s32 %s58, 1
      %s60 = scalar_select %p57, %s58, %s59
      %p63 = pneg %p57
      %p64 = scmp.eq.s32.totalorder %s15, 7
      %p65 = por %p63, %p64
      %p66 = scmp.ne.s32.totalorder %s58, %s61
      %p67 = scmp.eq.s32.totalorder %s15, 0
      %p68 = por %p66, %p67
      %p69 = scmp.ne.s32.totalorder %s58, %s61
      %p70 = scmp.eq.s32.totalorder %s20, 7
      %p71 = por %p69, %p70
      %p72 = scmp.ne.s32.totalorder %s61, %s62
      %p73 = scmp.eq.s32.totalorder %s20, 0
      %p74 = por %p72, %p73
      %p75 = scmp.ne.s32.totalorder %s61, %s62
      %p76 = scmp.eq.s32.totalorder %s21, 7
      %p77 = por %p75, %p76
      %p79 = scmp.ne.s32.totalorder %s62, %s78
      %p80 = scmp.eq.s32.totalorder %s21, 0
      %p81 = por %p79, %p80
      %s82 = ssub.s32 %s23, %s30
      %s83 = ssub.s32 %s22, %s34
      %s84 = sor.u32 %s82, %s83
      %p85 = scmp.eq.s32.totalorder %s84, 0
      %s87 = sadd.s32 %s86, 1
      %s88 = scalar_select %p85, %s86, %s87
      %p91 = pneg %p85
      %p92 = scmp.eq.s32.totalorder %s15, 7
      %p93 = por %p91, %p92
      %p94 = scmp.ne.s32.totalorder %s86, %s89
      %p95 = scmp.eq.s32.totalorder %s15, 0
      %p96 = por %p94, %p95
      %p97 = scmp.ne.s32.totalorder %s86, %s89
      %p98 = scmp.eq.s32.totalorder %s20, 7
      %p99 = por %p97, %p98
      %p100 = scmp.ne.s32.totalorder %s89, %s90
      %p101 = scmp.eq.s32.totalorder %s20, 0
      %p102 = por %p100, %p101
      %p103 = scmp.ne.s32.totalorder %s89, %s90
      %p104 = scmp.eq.s32.totalorder %s21, 7
      %p105 = por %p103, %p104
      %p107 = scmp.ne.s32.totalorder %s90, %s106
      %p108 = scmp.eq.s32.totalorder %s21, 0
      %p109 = por %p107, %p108
      %s110 = ssub.s32 %s22, %s34
      %p111 = scmp.eq.s32.totalorder %s110, 0
      %s113 = sadd.s32 %s112, 1
      %s114 = scalar_select %p111, %s112, %s113
      %p117 = pneg %p111
      %p118 = scmp.eq.s32.totalorder %s15, 7
      %p119 = por %p117, %p118
      %p120 = scmp.ne.s32.totalorder %s112, %s115
      %p121 = scmp.eq.s32.totalorder %s15, 0
      %p122 = por %p120, %p121
      %p123 = scmp.ne.s32.totalorder %s112, %s115
      %p124 = scmp.eq.s32.totalorder %s20, 7
      %p125 = por %p123, %p124
      %p126 = scmp.ne.s32.totalorder %s115, %s116
      %p127 = scmp.eq.s32.totalorder %s20, 0
      %p128 = por %p126, %p127
      %p129 = scmp.ne.s32.totalorder %s115, %s116
      %p130 = scmp.eq.s32.totalorder %s21, 7
      %p131 = por %p129, %p130
      %p133 = scmp.ne.s32.totalorder %s116, %s132
      %p134 = scmp.eq.s32.totalorder %s21, 0
      %p135 = por %p133, %p134
      %s136 = ssub.s32 %s23, %s30
      %s137 = ssub.s32 %s22, %s34
      %s138 = sor.u32 %s136, %s137
      %p139 = scmp.eq.s32.totalorder %s138, 0
      %s141 = sadd.s32 %s140, 1
      %s142 = scalar_select %p139, %s140, %s141
      %p145 = pneg %p139
      %p146 = scmp.eq.s32.totalorder %s15, 7
      %p147 = por %p145, %p146
      %p148 = scmp.ne.s32.totalorder %s140, %s143
      %p149 = scmp.eq.s32.totalorder %s15, 0
      %p150 = por %p148, %p149
      %p151 = scmp.ne.s32.totalorder %s140, %s143
      %p152 = scmp.eq.s32.totalorder %s20, 7
      %p153 = por %p151, %p152
      %p154 = scmp.ne.s32.totalorder %s143, %s144
      %p155 = scmp.eq.s32.totalorder %s20, 0
      %p156 = por %p154, %p155
      %p157 = scmp.ne.s32.totalorder %s143, %s144
      %p158 = scmp.eq.s32.totalorder %s21, 7
      %p159 = por %p157, %p158
      %p161 = scmp.ne.s32.totalorder %s144, %s160
      %p162 = scmp.eq.s32.totalorder %s21, 0
      %p163 = por %p161, %p162
      %s164 = ssub.s32 %s23, %s30
      %s165 = ssub.s32 %s22, %s34
      %s166 = sor.u32 %s164, %s165
      %p167 = scmp.eq.s32.totalorder %s166, 0
      %s169 = sadd.s32 %s168, 1
      %s170 = scalar_select %p167, %s168, %s169
      %p173 = pneg %p167
      %p174 = scmp.eq.s32.totalorder %s15, 7
      %p175 = por %p173, %p174
      %p176 = scmp.ne.s32.totalorder %s168, %s171
      %p177 = scmp.eq.s32.totalorder %s15, 0
      %p178 = por %p176, %p177
      %p179 = scmp.ne.s32.totalorder %s168, %s171
      %p180 = scmp.eq.s32.totalorder %s20, 7
      %p181 = por %p179, %p180
      %p182 = scmp.ne.s32.totalorder %s171, %s172
      %p183 = scmp.eq.s32.totalorder %s20, 0
      %p184 = por %p182, %p183
      %p185 = scmp.ne.s32.totalorder %s171, %s172
      %p186 = scmp.eq.s32.totalorder %s21, 7
      %p187 = por %p185, %p186
      %p189 = scmp.ne.s32.totalorder %s172, %s188
      %p190 = scmp.eq.s32.totalorder %s21, 0
      %p191 = por %p189, %p190
      %p192 = scmp.le.s32.totalorder 1, %s15
      %p193 = scmp.lt.s32.totalorder %s15, 9
      %p194 = pnand %p192, %p193
      %p195 = pneg %p194
      // Predicated region
      $region9: #{pre_gat_conv_wo.1} parent=5 // pred_check
        _
      $region10: #{pre_gat_conv_wo.1} parent=5 // pred_check_branch
        %197 = sbr.rel (%p194) target = $region12
      $region11: #{pre_gat_conv_wo.1} parent=5 // pred_region
        %s198 = ssub.s32 %s15, 1
        // Predicated region
        $region13: #{pre_gat_conv_wo.1} parent=11 // pred_check
          %p199 = pneg %p48
        $region14: #{pre_gat_conv_wo.1} parent=11 // pred_check_branch
          %201 = sbr.rel (%p199) target = $region16
        $region15: #{pre_gat_conv_wo.1} parent=11 // pred_region
          _
        $region16: #{pre_gat_conv_wo.1} parent=11 // pred_fallthru
          _
      $region12: #{pre_gat_conv_wo.1} parent=5 // pred_fallthru
        _
      %p202 = scmp.lt.s32.totalorder %s15, 8
      // Predicated region
      $region17: #{pre_gat_conv_wo.1} parent=5 // pred_check
        %p203 = pneg %p202
      $region18: #{pre_gat_conv_wo.1} parent=5 // pred_check_branch
        %205 = sbr.rel (%p203) target = $region20
      $region19: #{pre_gat_conv_wo.1} parent=5 // pred_region
        // Predicated region
        $region21: #{pre_gat_conv_wo.1} parent=19 // pred_check
          %p206 = pneg %p68
        $region22: #{pre_gat_conv_wo.1} parent=19 // pred_check_branch
          %208 = sbr.rel (%p206) target = $region24
        $region23: #{pre_gat_conv_wo.1} parent=19 // pred_region
          %p209 = scmp.lt.s32.totalorder %s23, 3
          %s210 = scalar_select %p209, %s23, 3
          %s211 = smul.addr %s210, 2
          %s212 = scalar_lea.vmem %s1, %s211
        $region24: #{pre_gat_conv_wo.1} parent=19 // pred_fallthru
          _
        // Predicated region
        $region25: #{pre_gat_conv_wo.1} parent=19 // pred_check
          %p213 = pneg %p96
        $region26: #{pre_gat_conv_wo.1} parent=19 // pred_check_branch
          %215 = sbr.rel (%p213) target = $region28
        $region27: #{pre_gat_conv_wo.1} parent=19 // pred_region
          %s216 = smul.u32 16, %s22
          %p217 = scmp.lt.s32.totalorder %s23, 3
          %s218 = scalar_select %p217, %s23, 3
          %p219 = scmp.lt.s32.totalorder %s216, 31
          %s220 = scalar_select %p219, %s216, 31
          %s221 = smul.addr %s218, 32
          %s222 = sadd.s32 %s220, %s221
          %s223 = smul.addr %s222, 8
          %s224 = scalar_lea.vmem %s2, %s223
          %s225 = smul.u32 16, %s22
        $region28: #{pre_gat_conv_wo.1} parent=19 // pred_fallthru
          _
        // Predicated region
        $region29: #{pre_gat_conv_wo.1} parent=19 // pred_check
          %p226 = pneg %p122
        $region30: #{pre_gat_conv_wo.1} parent=19 // pred_check_branch
          %228 = sbr.rel (%p226) target = $region32
        $region31: #{pre_gat_conv_wo.1} parent=19 // pred_region
          %s229 = smul.u32 16, %s22
          %p230 = scmp.lt.s32.totalorder %s229, 31
          %s231 = scalar_select %p230, %s229, 31
          %s232 = smul.addr %s231, 2
          %s233 = smul.addr %s232, 8
          %s234 = scalar_lea.vmem %s3, %s233
          %s235 = smul.u32 16, %s22
        $region32: #{pre_gat_conv_wo.1} parent=19 // pred_fallthru
          _
      $region20: #{pre_gat_conv_wo.1} parent=5 // pred_fallthru
        _
      %p236 = scmp.le.s32.totalorder 1, %s15
      %p237 = scmp.lt.s32.totalorder %s15, 9
      %p238 = pnand %p236, %p237
      %p239 = pneg %p238
      // Predicated region
      $region33: #{pre_gat_conv_wo.1} parent=5 // pred_check
        _
      $region34: #{pre_gat_conv_wo.1} parent=5 // pred_check_branch
        %241 = sbr.rel (%p238) target = $region36
      $region35: #{pre_gat_conv_wo.1} parent=5 // pred_region
        %s242 = ssub.s32 %s15, 1
        %p243 = pneg %p48
        %p244 = pneg %p45
        %p245 = scmp.lt.s32.totalorder %s25, 3
        %s246 = scalar_select %p245, %s25, 3
        %s247 = smul.addr %s246, 2
        %s248 = scalar_lea.vmem %s1, %s247
        %p249 = pneg %p74
        %p250 = pneg %p71
        %s251 = smul.u32 16, %s24
        %p252 = scmp.lt.s32.totalorder %s25, 3
        %s253 = scalar_select %p252, %s25, 3
        %p254 = scmp.lt.s32.totalorder %s251, 31
        %s255 = scalar_select %p254, %s251, 31
        %s256 = smul.addr %s253, 32
        %s257 = sadd.s32 %s255, %s256
        %s258 = smul.addr %s257, 8
        %s259 = scalar_lea.vmem %s2, %s258
        %p260 = pneg %p102
        %p261 = pneg %p99
        %s262 = smul.u32 16, %s24
        %p263 = scmp.lt.s32.totalorder %s262, 31
        %s264 = scalar_select %p263, %s262, 31
        %s265 = smul.addr %s264, 2
        %s266 = smul.addr %s265, 8
        %s267 = scalar_lea.vmem %s3, %s266
        %p268 = pneg %p128
        %p269 = pneg %p125
        %p270 = pneg %p156
        %p271 = pneg %p153
        %s272 = smul.u32 16, %s24
        %p273 = scmp.lt.s32.totalorder %s25, 3
        %s274 = scalar_select %p273, %s25, 3
        %p275 = scmp.lt.s32.totalorder %s272, 31
        %s276 = scalar_select %p275, %s272, 31
        %s277 = smul.addr %s274, 32
        %s278 = sadd.s32 %s276, %s277
        %s279 = smul.addr %s278, 8
        %s280 = scalar_lea.vmem %s4, %s279
        %p281 = pneg %p184
        %p282 = pneg %p181
        %s283 = sand.u32 %s171, 1
        %s284 = scalar_lea.sflag [#allocation3], %s283
        %s285 = sand.u32 %s171, 1
        %s286 = smul.addr %s285, 256
        %s287 = scalar_lea.vmem [#allocation2], %s286
        %p288 = scmp.lt.s32.totalorder %s25, 3
        %s289 = scalar_select %p288, %s25, 3
        %s290 = smul.addr %s289, 2
        %s291 = scalar_lea.vmem %s1, %s290
        %s292 = smul.u32 16, %s24
        %p293 = scmp.lt.s32.totalorder %s25, 3
        %s294 = scalar_select %p293, %s25, 3
        %p295 = scmp.lt.s32.totalorder %s292, 31
        %s296 = scalar_select %p295, %s292, 31
        %s297 = smul.addr %s294, 32
        %s298 = sadd.s32 %s296, %s297
        %s299 = smul.addr %s298, 8
        %s300 = scalar_lea.vmem %s2, %s299
        %s301 = smul.u32 16, %s24
        %s302 = smul.u32 16, %s24
        %p303 = scmp.lt.s32.totalorder %s302, 31
        %s304 = scalar_select %p303, %s302, 31
        %s305 = smul.addr %s304, 2
        %s306 = smul.addr %s305, 8
        %s307 = scalar_lea.vmem %s3, %s306
        %s308 = smul.u32 16, %s24
        %s309 = smul.u32 16, %s24
        %p310 = scmp.lt.s32.totalorder %s25, 3
        %s311 = scalar_select %p310, %s25, 3
        %p312 = scmp.lt.s32.totalorder %s309, 31
        %s313 = scalar_select %p312, %s309, 31
        %s314 = smul.addr %s311, 32
        %s315 = sadd.s32 %s313, %s314
        %s316 = smul.addr %s315, 8
        %s317 = scalar_lea.vmem %s4, %s316
        %s318 = smul.u32 16, %s24
        %s319 = smul.u32 16, %s24
        %s320 = smul.u32 %s25, 256
        %s321 = scalar_lea.vmem %s0, %s320
        %v322 = vld [vmem:[%s321] sm:$0xff]
        %v323 = vld [vmem:[%s321 + $0x8] sm:$0xff]
        %v324 = vld [vmem:[%s321 + $0x10] sm:$0xff]
        %v325 = vld [vmem:[%s321 + $0x18] sm:$0xff]
        %v326 = vld [vmem:[%s321 + $0x20] sm:$0xff]
        %v327 = vld [vmem:[%s321 + $0x28] sm:$0xff]
        %v328 = vld [vmem:[%s321 + $0x30] sm:$0xff]
        %v329 = vld [vmem:[%s321 + $0x38] sm:$0xff]
        %v330 = vld [vmem:[%s321 + $0x40] sm:$0xff]
        %v331 = vld [vmem:[%s321 + $0x48] sm:$0xff]
        %v332 = vld [vmem:[%s321 + $0x50] sm:$0xff]
        %v333 = vld [vmem:[%s321 + $0x58] sm:$0xff]
        %v334 = vld [vmem:[%s321 + $0x60] sm:$0xff]
        %v335 = vld [vmem:[%s321 + $0x68] sm:$0xff]
        %v336 = vld [vmem:[%s321 + $0x70] sm:$0xff]
        %v337 = vld [vmem:[%s321 + $0x78] sm:$0xff]
        %v338 = vld [vmem:[%s321 + $0x80] sm:$0xff]
        %v339 = vld [vmem:[%s321 + $0x88] sm:$0xff]
        %v340 = vld [vmem:[%s321 + $0x90] sm:$0xff]
        %v341 = vld [vmem:[%s321 + $0x98] sm:$0xff]
        %v342 = vld [vmem:[%s321 + $0xa0] sm:$0xff]
        %v343 = vld [vmem:[%s321 + $0xa8] sm:$0xff]
        %v344 = vld [vmem:[%s321 + $0xb0] sm:$0xff]
        %v345 = vld [vmem:[%s321 + $0xb8] sm:$0xff]
        %v346 = vld [vmem:[%s321 + $0xc0] sm:$0xff]
        %v347 = vld [vmem:[%s321 + $0xc8] sm:$0xff]
        %v348 = vld [vmem:[%s321 + $0xd0] sm:$0xff]
        %v349 = vld [vmem:[%s321 + $0xd8] sm:$0xff]
        %v350 = vld [vmem:[%s321 + $0xe0] sm:$0xff]
        %v351 = vld [vmem:[%s321 + $0xe8] sm:$0xff]
        %v352 = vld [vmem:[%s321 + $0xf0] sm:$0xff]
        %v353 = vld [vmem:[%s321 + $0xf8] sm:$0xff]
        %v354 = vld [vmem:[%s300] sm:$0xff]
        %v355 = vld [vmem:[%s300 + $0x8] sm:$0xff]
        %v356 = vld [vmem:[%s300 + $0x10] sm:$0xff]
        %v357 = vld [vmem:[%s300 + $0x18] sm:$0xff]
        %v358 = vld [vmem:[%s300 + $0x20] sm:$0xff]
        %v359 = vld [vmem:[%s300 + $0x28] sm:$0xff]
        %v360 = vld [vmem:[%s300 + $0x30] sm:$0xff]
        %v361 = vld [vmem:[%s300 + $0x38] sm:$0xff]
        %v362 = vld [vmem:[%s300 + $0x40] sm:$0xff]
        %v363 = vld [vmem:[%s300 + $0x48] sm:$0xff]
        %v364 = vld [vmem:[%s300 + $0x50] sm:$0xff]
        %v365 = vld [vmem:[%s300 + $0x58] sm:$0xff]
        %v366 = vld [vmem:[%s300 + $0x60] sm:$0xff]
        %v367 = vld [vmem:[%s300 + $0x68] sm:$0xff]
        %v368 = vld [vmem:[%s300 + $0x70] sm:$0xff]
        %v369 = vld [vmem:[%s300 + $0x78] sm:$0xff]
        %v370 = vld [vmem:[%s291] sm:$0x3]
        %372 = vset.pattern.permute.xlu0 0
        %373 = vperm.xlu0 %372, %v354
        %v374 = vpop.permute.xlu0 %373
        %377 = vset.pattern.permute.xlu0 0
        %378 = vperm.xlu0 %377, %v355
        %v379 = vpop.permute.xlu0 %378
        %382 = vset.pattern.permute.xlu0 0
        %383 = vperm.xlu0 %382, %v356
        %v384 = vpop.permute.xlu0 %383
        %387 = vset.pattern.permute.xlu0 0
        %388 = vperm.xlu0 %387, %v357
        %v389 = vpop.permute.xlu0 %388
        %392 = vset.pattern.permute.xlu0 0
        %393 = vperm.xlu0 %392, %v358
        %v394 = vpop.permute.xlu0 %393
        %397 = vset.pattern.permute.xlu0 0
        %398 = vperm.xlu0 %397, %v359
        %v399 = vpop.permute.xlu0 %398
        %402 = vset.pattern.permute.xlu0 0
        %403 = vperm.xlu0 %402, %v360
        %v404 = vpop.permute.xlu0 %403
        %407 = vset.pattern.permute.xlu0 0
        %408 = vperm.xlu0 %407, %v361
        %v409 = vpop.permute.xlu0 %408
        %412 = vset.pattern.permute.xlu0 0
        %413 = vperm.xlu0 %412, %v362
        %v414 = vpop.permute.xlu0 %413
        %417 = vset.pattern.permute.xlu0 0
        %418 = vperm.xlu0 %417, %v363
        %v419 = vpop.permute.xlu0 %418
        %422 = vset.pattern.permute.xlu0 0
        %423 = vperm.xlu0 %422, %v364
        %v424 = vpop.permute.xlu0 %423
        %427 = vset.pattern.permute.xlu0 0
        %428 = vperm.xlu0 %427, %v365
        %v429 = vpop.permute.xlu0 %428
        %432 = vset.pattern.permute.xlu0 0
        %433 = vperm.xlu0 %432, %v366
        %v434 = vpop.permute.xlu0 %433
        %437 = vset.pattern.permute.xlu0 0
        %438 = vperm.xlu0 %437, %v367
        %v439 = vpop.permute.xlu0 %438
        %442 = vset.pattern.permute.xlu0 0
        %443 = vperm.xlu0 %442, %v368
        %v444 = vpop.permute.xlu0 %443
        %447 = vset.pattern.permute.xlu0 0
        %448 = vperm.xlu0 %447, %v369
        %v449 = vpop.permute.xlu0 %448
        %v452 = vlaneseq
        %v453 = vshrl.u32 %v452, 7
        %v454 = vsub.s32 0, %v453
        %v455 = vrot.slane %v370, %v454
        %v456 = vlaneseq
        %v457 = vshrl.u32 %v456, 7
        %v458 = vsub.s32 1, %v457
        %v459 = vrot.slane %v370, %v458
        %v462 = vadd.f32 %v374, %v455
        %v463 = vadd.f32 %v374, %v459
        %v464 = vadd.f32 %v379, %v455
        %v465 = vadd.f32 %v379, %v459
        %v466 = vadd.f32 %v384, %v455
        %v467 = vadd.f32 %v384, %v459
        %v468 = vadd.f32 %v389, %v455
        %v469 = vadd.f32 %v389, %v459
        %v470 = vadd.f32 %v394, %v455
        %v471 = vadd.f32 %v394, %v459
        %v472 = vadd.f32 %v399, %v455
        %v473 = vadd.f32 %v399, %v459
        %v474 = vadd.f32 %v404, %v455
        %v475 = vadd.f32 %v404, %v459
        %v476 = vadd.f32 %v409, %v455
        %v477 = vadd.f32 %v409, %v459
        %v478 = vadd.f32 %v414, %v455
        %v479 = vadd.f32 %v414, %v459
        %v480 = vadd.f32 %v419, %v455
        %v481 = vadd.f32 %v419, %v459
        %v482 = vadd.f32 %v424, %v455
        %v483 = vadd.f32 %v424, %v459
        %v484 = vadd.f32 %v429, %v455
        %v485 = vadd.f32 %v429, %v459
        %v486 = vadd.f32 %v434, %v455
        %v487 = vadd.f32 %v434, %v459
        %v488 = vadd.f32 %v439, %v455
        %v489 = vadd.f32 %v439, %v459
        %v490 = vadd.f32 %v444, %v455
        %v491 = vadd.f32 %v444, %v459
        %v492 = vadd.f32 %v449, %v455
        %v493 = vadd.f32 %v449, %v459
        %v494 = vmul.f32 %v462, 0.2
        %v495 = vmul.f32 %v463, 0.2
        %v496 = vmul.f32 %v464, 0.2
        %v497 = vmul.f32 %v465, 0.2
        %v498 = vmul.f32 %v466, 0.2
        %v499 = vmul.f32 %v467, 0.2
        %v500 = vmul.f32 %v468, 0.2
        %v501 = vmul.f32 %v469, 0.2
        %v502 = vmul.f32 %v470, 0.2
        %v503 = vmul.f32 %v471, 0.2
        %v504 = vmul.f32 %v472, 0.2
        %v505 = vmul.f32 %v473, 0.2
        %v506 = vmul.f32 %v474, 0.2
        %v507 = vmul.f32 %v475, 0.2
        %v508 = vmul.f32 %v476, 0.2
        %v509 = vmul.f32 %v477, 0.2
        %v510 = vmul.f32 %v478, 0.2
        %v511 = vmul.f32 %v479, 0.2
        %v512 = vmul.f32 %v480, 0.2
        %v513 = vmul.f32 %v481, 0.2
        %v514 = vmul.f32 %v482, 0.2
        %v515 = vmul.f32 %v483, 0.2
        %v516 = vmul.f32 %v484, 0.2
        %v517 = vmul.f32 %v485, 0.2
        %v518 = vmul.f32 %v486, 0.2
        %v519 = vmul.f32 %v487, 0.2
        %v520 = vmul.f32 %v488, 0.2
        %v521 = vmul.f32 %v489, 0.2
        %v522 = vmul.f32 %v490, 0.2
        %v523 = vmul.f32 %v491, 0.2
        %v524 = vmul.f32 %v492, 0.2
        %v525 = vmul.f32 %v493, 0.2
        %v526 = vmax.f32 %v462, %v494
        %v527 = vmax.f32 %v463, %v495
        %v528 = vmax.f32 %v464, %v496
        %v529 = vmax.f32 %v465, %v497
        %v530 = vmax.f32 %v466, %v498
        %v531 = vmax.f32 %v467, %v499
        %v532 = vmax.f32 %v468, %v500
        %v533 = vmax.f32 %v469, %v501
        %v534 = vmax.f32 %v470, %v502
        %v535 = vmax.f32 %v471, %v503
        %v536 = vmax.f32 %v472, %v504
        %v537 = vmax.f32 %v473, %v505
        %v538 = vmax.f32 %v474, %v506
        %v539 = vmax.f32 %v475, %v507
        %v540 = vmax.f32 %v476, %v508
        %v541 = vmax.f32 %v477, %v509
        %v542 = vmax.f32 %v478, %v510
        %v543 = vmax.f32 %v479, %v511
        %v544 = vmax.f32 %v480, %v512
        %v545 = vmax.f32 %v481, %v513
        %v546 = vmax.f32 %v482, %v514
        %v547 = vmax.f32 %v483, %v515
        %v548 = vmax.f32 %v484, %v516
        %v549 = vmax.f32 %v485, %v517
        %v550 = vmax.f32 %v486, %v518
        %v551 = vmax.f32 %v487, %v519
        %v552 = vmax.f32 %v488, %v520
        %v553 = vmax.f32 %v489, %v521
        %v554 = vmax.f32 %v490, %v522
        %v555 = vmax.f32 %v491, %v523
        %v556 = vmax.f32 %v492, %v524
        %v557 = vmax.f32 %v493, %v525
        %v558 = vmax.f32 %v526, %v527
        %559 = vmax.xlane.f32.xlu0 %v558
        %v560 = vpop.xlane.xlu0 %559
        %v561 = vmax.f32 %v528, %v529
        %562 = vmax.xlane.f32.xlu0 %v561
        %v563 = vpop.xlane.xlu0 %562
        %v564 = vmax.f32 %v530, %v531
        %565 = vmax.xlane.f32.xlu0 %v564
        %v566 = vpop.xlane.xlu0 %565
        %v567 = vmax.f32 %v532, %v533
        %568 = vmax.xlane.f32.xlu0 %v567
        %v569 = vpop.xlane.xlu0 %568
        %v570 = vmax.f32 %v534, %v535
        %571 = vmax.xlane.f32.xlu0 %v570
        %v572 = vpop.xlane.xlu0 %571
        %v573 = vmax.f32 %v536, %v537
        %574 = vmax.xlane.f32.xlu0 %v573
        %v575 = vpop.xlane.xlu0 %574
        %v576 = vmax.f32 %v538, %v539
        %577 = vmax.xlane.f32.xlu0 %v576
        %v578 = vpop.xlane.xlu0 %577
        %v579 = vmax.f32 %v540, %v541
        %580 = vmax.xlane.f32.xlu0 %v579
        %v581 = vpop.xlane.xlu0 %580
        %v582 = vmax.f32 %v542, %v543
        %583 = vmax.xlane.f32.xlu0 %v582
        %v584 = vpop.xlane.xlu0 %583
        %v585 = vmax.f32 %v544, %v545
        %586 = vmax.xlane.f32.xlu0 %v585
        %v587 = vpop.xlane.xlu0 %586
        %v588 = vmax.f32 %v546, %v547
        %589 = vmax.xlane.f32.xlu0 %v588
        %v590 = vpop.xlane.xlu0 %589
        %v591 = vmax.f32 %v548, %v549
        %592 = vmax.xlane.f32.xlu0 %v591
        %v593 = vpop.xlane.xlu0 %592
        %v594 = vmax.f32 %v550, %v551
        %595 = vmax.xlane.f32.xlu0 %v594
        %v596 = vpop.xlane.xlu0 %595
        %v597 = vmax.f32 %v552, %v553
        %598 = vmax.xlane.f32.xlu0 %v597
        %v599 = vpop.xlane.xlu0 %598
        %v600 = vmax.f32 %v554, %v555
        %601 = vmax.xlane.f32.xlu0 %v600
        %v602 = vpop.xlane.xlu0 %601
        %v603 = vmax.f32 %v556, %v557
        %604 = vmax.xlane.f32.xlu0 %v603
        %v605 = vpop.xlane.xlu0 %604
        %v606 = vsub.f32 %v526, %v560
        %v607 = vsub.f32 %v527, %v560
        %v608 = vsub.f32 %v528, %v563
        %v609 = vsub.f32 %v529, %v563
        %v610 = vsub.f32 %v530, %v566
        %v611 = vsub.f32 %v531, %v566
        %v612 = vsub.f32 %v532, %v569
        %v613 = vsub.f32 %v533, %v569
        %v614 = vsub.f32 %v534, %v572
        %v615 = vsub.f32 %v535, %v572
        %v616 = vsub.f32 %v536, %v575
        %v617 = vsub.f32 %v537, %v575
        %v618 = vsub.f32 %v538, %v578
        %v619 = vsub.f32 %v539, %v578
        %v620 = vsub.f32 %v540, %v581
        %v621 = vsub.f32 %v541, %v581
        %v622 = vsub.f32 %v542, %v584
        %v623 = vsub.f32 %v543, %v584
        %v624 = vsub.f32 %v544, %v587
        %v625 = vsub.f32 %v545, %v587
        %v626 = vsub.f32 %v546, %v590
        %v627 = vsub.f32 %v547, %v590
        %v628 = vsub.f32 %v548, %v593
        %v629 = vsub.f32 %v549, %v593
        %v630 = vsub.f32 %v550, %v596
        %v631 = vsub.f32 %v551, %v596
        %v632 = vsub.f32 %v552, %v599
        %v633 = vsub.f32 %v553, %v599
        %v634 = vsub.f32 %v554, %v602
        %v635 = vsub.f32 %v555, %v602
        %v636 = vsub.f32 %v556, %v605
        %v637 = vsub.f32 %v557, %v605
        %v638 = vmul.f32 %v606, 1.442695
        %v639 = vpow.pop %v638
        %v640 = vmul.f32 %v607, 1.442695
        %v641 = vpow.pop %v640
        %v642 = vmul.f32 %v608, 1.442695
        %v643 = vpow.pop %v642
        %v644 = vmul.f32 %v609, 1.442695
        %v645 = vpow.pop %v644
        %v646 = vmul.f32 %v610, 1.442695
        %v647 = vpow.pop %v646
        %v648 = vmul.f32 %v611, 1.442695
        %v649 = vpow.pop %v648
        %v650 = vmul.f32 %v612, 1.442695
        %v651 = vpow.pop %v650
        %v652 = vmul.f32 %v613, 1.442695
        %v653 = vpow.pop %v652
        %v654 = vmul.f32 %v614, 1.442695
        %v655 = vpow.pop %v654
        %v656 = vmul.f32 %v615, 1.442695
        %v657 = vpow.pop %v656
        %v658 = vmul.f32 %v616, 1.442695
        %v659 = vpow.pop %v658
        %v660 = vmul.f32 %v617, 1.442695
        %v661 = vpow.pop %v660
        %v662 = vmul.f32 %v618, 1.442695
        %v663 = vpow.pop %v662
        %v664 = vmul.f32 %v619, 1.442695
        %v665 = vpow.pop %v664
        %v666 = vmul.f32 %v620, 1.442695
        %v667 = vpow.pop %v666
        %v668 = vmul.f32 %v621, 1.442695
        %v669 = vpow.pop %v668
        %v670 = vmul.f32 %v622, 1.442695
        %v671 = vpow.pop %v670
        %v672 = vmul.f32 %v623, 1.442695
        %v673 = vpow.pop %v672
        %v674 = vmul.f32 %v624, 1.442695
        %v675 = vpow.pop %v674
        %v676 = vmul.f32 %v625, 1.442695
        %v677 = vpow.pop %v676
        %v678 = vmul.f32 %v626, 1.442695
        %v679 = vpow.pop %v678
        %v680 = vmul.f32 %v627, 1.442695
        %v681 = vpow.pop %v680
        %v682 = vmul.f32 %v628, 1.442695
        %v683 = vpow.pop %v682
        %v684 = vmul.f32 %v629, 1.442695
        %v685 = vpow.pop %v684
        %v686 = vmul.f32 %v630, 1.442695
        %v687 = vpow.pop %v686
        %v688 = vmul.f32 %v631, 1.442695
        %v689 = vpow.pop %v688
        %v690 = vmul.f32 %v632, 1.442695
        %v691 = vpow.pop %v690
        %v692 = vmul.f32 %v633, 1.442695
        %v693 = vpow.pop %v692
        %v694 = vmul.f32 %v634, 1.442695
        %v695 = vpow.pop %v694
        %v696 = vmul.f32 %v635, 1.442695
        %v697 = vpow.pop %v696
        %v698 = vmul.f32 %v636, 1.442695
        %v699 = vpow.pop %v698
        %v700 = vmul.f32 %v637, 1.442695
        %v701 = vpow.pop %v700
        %v702 = vld [vmem:[%s307] sm:$0xff]
        %v703 = vld [vmem:[%s307 + $0x8] sm:$0xff]
        %v704 = vld [vmem:[%s307 + $0x10] sm:$0xff]
        %v705 = vld [vmem:[%s307 + $0x18] sm:$0xff]
        %v706 = vld [vmem:[%s307 + $0x20] sm:$0xff]
        %v707 = vld [vmem:[%s307 + $0x28] sm:$0xff]
        %v708 = vld [vmem:[%s307 + $0x30] sm:$0xff]
        %v709 = vld [vmem:[%s307 + $0x38] sm:$0xff]
        %v710 = vld [vmem:[%s307 + $0x40] sm:$0xff]
        %v711 = vld [vmem:[%s307 + $0x48] sm:$0xff]
        %v712 = vld [vmem:[%s307 + $0x50] sm:$0xff]
        %v713 = vld [vmem:[%s307 + $0x58] sm:$0xff]
        %v714 = vld [vmem:[%s307 + $0x60] sm:$0xff]
        %v715 = vld [vmem:[%s307 + $0x68] sm:$0xff]
        %v716 = vld [vmem:[%s307 + $0x70] sm:$0xff]
        %v717 = vld [vmem:[%s307 + $0x78] sm:$0xff]
        %v718 = vld [vmem:[%s307 + $0x80] sm:$0xff]
        %v719 = vld [vmem:[%s307 + $0x88] sm:$0xff]
        %v720 = vld [vmem:[%s307 + $0x90] sm:$0xff]
        %v721 = vld [vmem:[%s307 + $0x98] sm:$0xff]
        %v722 = vld [vmem:[%s307 + $0xa0] sm:$0xff]
        %v723 = vld [vmem:[%s307 + $0xa8] sm:$0xff]
        %v724 = vld [vmem:[%s307 + $0xb0] sm:$0xff]
        %v725 = vld [vmem:[%s307 + $0xb8] sm:$0xff]
        %v726 = vld [vmem:[%s307 + $0xc0] sm:$0xff]
        %v727 = vld [vmem:[%s307 + $0xc8] sm:$0xff]
        %v728 = vld [vmem:[%s307 + $0xd0] sm:$0xff]
        %v729 = vld [vmem:[%s307 + $0xd8] sm:$0xff]
        %v730 = vld [vmem:[%s307 + $0xe0] sm:$0xff]
        %v731 = vld [vmem:[%s307 + $0xe8] sm:$0xff]
        %v732 = vld [vmem:[%s307 + $0xf0] sm:$0xff]
        %v733 = vld [vmem:[%s307 + $0xf8] sm:$0xff]
        %v734 = vmul.f32 %v639, %v702
        %v735 = vmul.f32 %v641, %v703
        %v736 = vmul.f32 %v643, %v704
        %v737 = vmul.f32 %v645, %v705
        %v738 = vmul.f32 %v647, %v706
        %v739 = vmul.f32 %v649, %v707
        %v740 = vmul.f32 %v651, %v708
        %v741 = vmul.f32 %v653, %v709
        %v742 = vmul.f32 %v655, %v710
        %v743 = vmul.f32 %v657, %v711
        %v744 = vmul.f32 %v659, %v712
        %v745 = vmul.f32 %v661, %v713
        %v746 = vmul.f32 %v663, %v714
        %v747 = vmul.f32 %v665, %v715
        %v748 = vmul.f32 %v667, %v716
        %v749 = vmul.f32 %v669, %v717
        %v750 = vmul.f32 %v671, %v718
        %v751 = vmul.f32 %v673, %v719
        %v752 = vmul.f32 %v675, %v720
        %v753 = vmul.f32 %v677, %v721
        %v754 = vmul.f32 %v679, %v722
        %v755 = vmul.f32 %v681, %v723
        %v756 = vmul.f32 %v683, %v724
        %v757 = vmul.f32 %v685, %v725
        %v758 = vmul.f32 %v687, %v726
        %v759 = vmul.f32 %v689, %v727
        %v760 = vmul.f32 %v691, %v728
        %v761 = vmul.f32 %v693, %v729
        %v762 = vmul.f32 %v695, %v730
        %v763 = vmul.f32 %v697, %v731
        %v764 = vmul.f32 %v699, %v732
        %v765 = vmul.f32 %v701, %v733
        %v766 = vadd.f32 %v734, %v735
        %767 = vadd.xlane.f32.xlu0 %v766
        %v768 = vpop.xlane.xlu0 %767
        %v769 = vadd.f32 %v736, %v737
        %770 = vadd.xlane.f32.xlu0 %v769
        %v771 = vpop.xlane.xlu0 %770
        %v772 = vadd.f32 %v738, %v739
        %773 = vadd.xlane.f32.xlu0 %v772
        %v774 = vpop.xlane.xlu0 %773
        %v775 = vadd.f32 %v740, %v741
        %776 = vadd.xlane.f32.xlu0 %v775
        %v777 = vpop.xlane.xlu0 %776
        %v778 = vadd.f32 %v742, %v743
        %779 = vadd.xlane.f32.xlu0 %v778
        %v780 = vpop.xlane.xlu0 %779
        %v781 = vadd.f32 %v744, %v745
        %782 = vadd.xlane.f32.xlu0 %v781
        %v783 = vpop.xlane.xlu0 %782
        %v784 = vadd.f32 %v746, %v747
        %785 = vadd.xlane.f32.xlu0 %v784
        %v786 = vpop.xlane.xlu0 %785
        %v787 = vadd.f32 %v748, %v749
        %788 = vadd.xlane.f32.xlu0 %v787
        %v789 = vpop.xlane.xlu0 %788
        %v790 = vadd.f32 %v750, %v751
        %791 = vadd.xlane.f32.xlu0 %v790
        %v792 = vpop.xlane.xlu0 %791
        %v793 = vadd.f32 %v752, %v753
        %794 = vadd.xlane.f32.xlu0 %v793
        %v795 = vpop.xlane.xlu0 %794
        %v796 = vadd.f32 %v754, %v755
        %797 = vadd.xlane.f32.xlu0 %v796
        %v798 = vpop.xlane.xlu0 %797
        %v799 = vadd.f32 %v756, %v757
        %800 = vadd.xlane.f32.xlu0 %v799
        %v801 = vpop.xlane.xlu0 %800
        %v802 = vadd.f32 %v758, %v759
        %803 = vadd.xlane.f32.xlu0 %v802
        %v804 = vpop.xlane.xlu0 %803
        %v805 = vadd.f32 %v760, %v761
        %806 = vadd.xlane.f32.xlu0 %v805
        %v807 = vpop.xlane.xlu0 %806
        %v808 = vadd.f32 %v762, %v763
        %809 = vadd.xlane.f32.xlu0 %v808
        %v810 = vpop.xlane.xlu0 %809
        %v811 = vadd.f32 %v764, %v765
        %812 = vadd.xlane.f32.xlu0 %v811
        %v813 = vpop.xlane.xlu0 %812
        %v814 = vrcp.pop %v768
        %v815 = vrcp.pop %v771
        %v816 = vrcp.pop %v774
        %v817 = vrcp.pop %v777
        %v818 = vrcp.pop %v780
        %v819 = vrcp.pop %v783
        %v820 = vrcp.pop %v786
        %v821 = vrcp.pop %v789
        %v822 = vrcp.pop %v792
        %v823 = vrcp.pop %v795
        %v824 = vrcp.pop %v798
        %v825 = vrcp.pop %v801
        %v826 = vrcp.pop %v804
        %v827 = vrcp.pop %v807
        %v828 = vrcp.pop %v810
        %v829 = vrcp.pop %v813
        %v830 = vmul.f32 %v734, %v814
        %v831 = vmul.f32 %v735, %v814
        %v832 = vmul.f32 %v736, %v815
        %v833 = vmul.f32 %v737, %v815
        %v834 = vmul.f32 %v738, %v816
        %v835 = vmul.f32 %v739, %v816
        %v836 = vmul.f32 %v740, %v817
        %v837 = vmul.f32 %v741, %v817
        %v838 = vmul.f32 %v742, %v818
        %v839 = vmul.f32 %v743, %v818
        %v840 = vmul.f32 %v744, %v819
        %v841 = vmul.f32 %v745, %v819
        %v842 = vmul.f32 %v746, %v820
        %v843 = vmul.f32 %v747, %v820
        %v844 = vmul.f32 %v748, %v821
        %v845 = vmul.f32 %v749, %v821
        %v846 = vmul.f32 %v750, %v822
        %v847 = vmul.f32 %v751, %v822
        %v848 = vmul.f32 %v752, %v823
        %v849 = vmul.f32 %v753, %v823
        %v850 = vmul.f32 %v754, %v824
        %v851 = vmul.f32 %v755, %v824
        %v852 = vmul.f32 %v756, %v825
        %v853 = vmul.f32 %v757, %v825
        %v854 = vmul.f32 %v758, %v826
        %v855 = vmul.f32 %v759, %v826
        %v856 = vmul.f32 %v760, %v827
        %v857 = vmul.f32 %v761, %v827
        %v858 = vmul.f32 %v762, %v828
        %v859 = vmul.f32 %v763, %v828
        %v860 = vmul.f32 %v764, %v829
        %v861 = vmul.f32 %v765, %v829
        %862 = vmatprep.subr.mxu0 0.0
        %863 = vmatpush1.msra.mxu0 %v322
        %864 = vmatprep.subr.mxu0 0.0
        %865 = vmatpush1.msra.mxu0 %v323
        %866 = vmatprep.subr.mxu0 0.0
        %867 = vmatpush1.msra.mxu0 %v324
        %868 = vmatprep.subr.mxu0 0.0
        %869 = vmatpush1.msra.mxu0 %v325
        %870 = vmatprep.subr.mxu0 0.0
        %871 = vmatpush1.msra.mxu0 %v326
        %872 = vmatprep.subr.mxu0 0.0
        %873 = vmatpush1.msra.mxu0 %v327
        %874 = vmatprep.subr.mxu0 0.0
        %875 = vmatpush1.msra.mxu0 %v328
        %876 = vmatprep.subr.mxu0 0.0
        %877 = vmatpush1.msra.mxu0 %v329
        %878 = vmatprep.subr.mxu0 0.0
        %879 = vmatpush1.msra.mxu0 %v330
        %880 = vmatprep.subr.mxu0 0.0
        %881 = vmatpush1.msra.mxu0 %v331
        %882 = vmatprep.subr.mxu0 0.0
        %883 = vmatpush1.msra.mxu0 %v332
        %884 = vmatprep.subr.mxu0 0.0
        %885 = vmatpush1.msra.mxu0 %v333
        %886 = vmatprep.subr.mxu0 0.0
        %887 = vmatpush1.msra.mxu0 %v334
        %888 = vmatprep.subr.mxu0 0.0
        %889 = vmatpush1.msra.mxu0 %v335
        %890 = vmatprep.subr.mxu0 0.0
        %891 = vmatpush1.msra.mxu0 %v336
        %892 = vmatprep.subr.mxu0 0.0
        %893 = vmatpush1.msra.mxu0 %v337
        %894 = vmatprep.subr.mxu0 0.0
        %895 = vmatpush1.msra.mxu0 %v338
        %896 = vmatprep.subr.mxu0 0.0
        %897 = vmatpush1.msra.mxu0 %v339
        %898 = vmatprep.subr.mxu0 0.0
        %899 = vmatpush1.msra.mxu0 %v340
        %900 = vmatprep.subr.mxu0 0.0
        %901 = vmatpush1.msra.mxu0 %v341
        %902 = vmatprep.subr.mxu0 0.0
        %903 = vmatpush1.msra.mxu0 %v342
        %904 = vmatprep.subr.mxu0 0.0
        %905 = vmatpush1.msra.mxu0 %v343
        %906 = vmatprep.subr.mxu0 0.0
        %907 = vmatpush1.msra.mxu0 %v344
        %908 = vmatprep.subr.mxu0 0.0
        %909 = vmatpush1.msra.mxu0 %v345
        %910 = vmatprep.subr.mxu0 0.0
        %911 = vmatpush1.msra.mxu0 %v346
        %912 = vmatprep.subr.mxu0 0.0
        %913 = vmatpush1.msra.mxu0 %v347
        %914 = vmatprep.subr.mxu0 0.0
        %915 = vmatpush1.msra.mxu0 %v348
        %916 = vmatprep.subr.mxu0 0.0
        %917 = vmatpush1.msra.mxu0 %v349
        %918 = vmatprep.subr.mxu0 0.0
        %919 = vmatpush1.msra.mxu0 %v350
        %920 = vmatprep.subr.mxu0 0.0
        %921 = vmatpush1.msra.mxu0 %v351
        %922 = vmatprep.subr.mxu0 0.0
        %923 = vmatpush1.msra.mxu0 %v352
        %924 = vmatprep.subr.mxu0 0.0
        %925 = vmatpush1.msra.mxu0 %v353
        %926 = vmatprep.mubr.f32.mxu0 %v831
        %927 = vmatmul.mubr.f32.gmra.mrb[0].mxu0 %v830
        %v928 = vpop.f32.mrb[0].mxu0
        %v929 = vadd.f32 0.0, %v928
        %v930 = vpop.f32.mrb[0].mxu0
        %931 = vmatprep.mubr.f32.mxu0 %v833
        %932 = vmatmul.mubr.f32.gmra.mrb[0].mxu0 %v832
        %v933 = vpop.f32.mrb[0].mxu0
        %v934 = vadd.f32 0.0, %v933
        %v935 = vpop.f32.mrb[0].mxu0
        %936 = vmatprep.mubr.f32.mxu0 %v835
        %937 = vmatmul.mubr.f32.gmra.mrb[0].mxu0 %v834
        %v938 = vpop.f32.mrb[0].mxu0
        %v939 = vadd.f32 0.0, %v938
        %v940 = vpop.f32.mrb[0].mxu0
        %941 = vmatprep.mubr.f32.mxu0 %v837
        %942 = vmatmul.mubr.f32.gmra.mrb[0].mxu0 %v836
        %v943 = vpop.f32.mrb[0].mxu0
        %v944 = vadd.f32 0.0, %v943
        %v945 = vpop.f32.mrb[0].mxu0
        %946 = vmatprep.mubr.f32.mxu0 %v839
        %947 = vmatmul.mubr.f32.gmra.mrb[0].mxu0 %v838
        %v948 = vpop.f32.mrb[0].mxu0
        %v949 = vadd.f32 0.0, %v948
        %v950 = vpop.f32.mrb[0].mxu0
        %951 = vmatprep.mubr.f32.mxu0 %v841
        %952 = vmatmul.mubr.f32.gmra.mrb[0].mxu0 %v840
        %v953 = vpop.f32.mrb[0].mxu0
        %v954 = vadd.f32 0.0, %v953
        %v955 = vpop.f32.mrb[0].mxu0
        %956 = vmatprep.mubr.f32.mxu0 %v843
        %957 = vmatmul.mubr.f32.gmra.mrb[0].mxu0 %v842
        %v958 = vpop.f32.mrb[0].mxu0
        %v959 = vadd.f32 0.0, %v958
        %v960 = vpop.f32.mrb[0].mxu0
        %961 = vmatprep.mubr.f32.mxu0 %v845
        %962 = vmatmul.mubr.f32.gmra.mrb[0].mxu0 %v844
        %v963 = vpop.f32.mrb[0].mxu0
        %v964 = vadd.f32 0.0, %v963
        %v965 = vpop.f32.mrb[0].mxu0
        %966 = vmatprep.mubr.f32.mxu0 %v847
        %967 = vmatmul.mubr.f32.gmra.mrb[0].mxu0 %v846
        %v968 = vpop.f32.mrb[0].mxu0
        %v969 = vadd.f32 0.0, %v968
        %v970 = vpop.f32.mrb[0].mxu0
        %971 = vmatprep.mubr.f32.mxu0 %v849
        %972 = vmatmul.mubr.f32.gmra.mrb[0].mxu0 %v848
        %v973 = vpop.f32.mrb[0].mxu0
        %v974 = vadd.f32 0.0, %v973
        %v975 = vpop.f32.mrb[0].mxu0
        %976 = vmatprep.mubr.f32.mxu0 %v851
        %977 = vmatmul.mubr.f32.gmra.mrb[0].mxu0 %v850
        %v978 = vpop.f32.mrb[0].mxu0
        %v979 = vadd.f32 0.0, %v978
        %v980 = vpop.f32.mrb[0].mxu0
        %981 = vmatprep.mubr.f32.mxu0 %v853
        %982 = vmatmul.mubr.f32.gmra.mrb[0].mxu0 %v852
        %v983 = vpop.f32.mrb[0].mxu0
        %v984 = vadd.f32 0.0, %v983
        %v985 = vpop.f32.mrb[0].mxu0
        %986 = vmatprep.mubr.f32.mxu0 %v855
        %987 = vmatmul.mubr.f32.gmra.mrb[0].mxu0 %v854
        %v988 = vpop.f32.mrb[0].mxu0
        %v989 = vadd.f32 0.0, %v988
        %v990 = vpop.f32.mrb[0].mxu0
        %991 = vmatprep.mubr.f32.mxu0 %v857
        %992 = vmatmul.mubr.f32.gmra.mrb[0].mxu0 %v856
        %v993 = vpop.f32.mrb[0].mxu0
        %v994 = vadd.f32 0.0, %v993
        %v995 = vpop.f32.mrb[0].mxu0
        %996 = vmatprep.mubr.f32.mxu0 %v859
        %997 = vmatmul.mubr.f32.gmra.mrb[0].mxu0 %v858
        %v998 = vpop.f32.mrb[0].mxu0
        %v999 = vadd.f32 0.0, %v998
        %v1000 = vpop.f32.mrb[0].mxu0
        %1001 = vmatprep.mubr.f32.mxu0 %v861
        %1002 = vmatmul.mubr.f32.gmra.mrb[0].mxu0 %v860
        %v1003 = vpop.f32.mrb[0].mxu0
        %v1004 = vadd.f32 0.0, %v1003
        %v1005 = vpop.f32.mrb[0].mxu0
        %1006 = vdwg.mxu0
        %vm1007 = vcmask 130048
        %1008 = vst.msk [vmem:[%s317] sm:$0xff] %vm1007, %v929
        %1009 = vst.msk [vmem:[%s317 + $0x8] sm:$0xff] %vm1007, %v934
        %1010 = vst.msk [vmem:[%s317 + $0x10] sm:$0xff] %vm1007, %v939
        %1011 = vst.msk [vmem:[%s317 + $0x18] sm:$0xff] %vm1007, %v944
        %1012 = vst.msk [vmem:[%s317 + $0x20] sm:$0xff] %vm1007, %v949
        %1013 = vst.msk [vmem:[%s317 + $0x28] sm:$0xff] %vm1007, %v954
        %1014 = vst.msk [vmem:[%s317 + $0x30] sm:$0xff] %vm1007, %v959
        %1015 = vst.msk [vmem:[%s317 + $0x38] sm:$0xff] %vm1007, %v964
        %1016 = vst.msk [vmem:[%s317 + $0x40] sm:$0xff] %vm1007, %v969
        %1017 = vst.msk [vmem:[%s317 + $0x48] sm:$0xff] %vm1007, %v974
        %1018 = vst.msk [vmem:[%s317 + $0x50] sm:$0xff] %vm1007, %v979
        %1019 = vst.msk [vmem:[%s317 + $0x58] sm:$0xff] %vm1007, %v984
        %1020 = vst.msk [vmem:[%s317 + $0x60] sm:$0xff] %vm1007, %v989
        %1021 = vst.msk [vmem:[%s317 + $0x68] sm:$0xff] %vm1007, %v994
        %1022 = vst.msk [vmem:[%s317 + $0x70] sm:$0xff] %vm1007, %v999
        %1023 = vst.msk [vmem:[%s317 + $0x78] sm:$0xff] %vm1007, %v1004
        %1024 = vst [vmem:[%s287] sm:$0xff] %v830
        %1025 = vst [vmem:[%s287 + $0x8] sm:$0xff] %v831
        %1026 = vst [vmem:[%s287 + $0x10] sm:$0xff] %v832
        %1027 = vst [vmem:[%s287 + $0x18] sm:$0xff] %v833
        %1028 = vst [vmem:[%s287 + $0x20] sm:$0xff] %v834
        %1029 = vst [vmem:[%s287 + $0x28] sm:$0xff] %v835
        %1030 = vst [vmem:[%s287 + $0x30] sm:$0xff] %v836
        %1031 = vst [vmem:[%s287 + $0x38] sm:$0xff] %v837
        %1032 = vst [vmem:[%s287 + $0x40] sm:$0xff] %v838
        %1033 = vst [vmem:[%s287 + $0x48] sm:$0xff] %v839
        %1034 = vst [vmem:[%s287 + $0x50] sm:$0xff] %v840
        %1035 = vst [vmem:[%s287 + $0x58] sm:$0xff] %v841
        %1036 = vst [vmem:[%s287 + $0x60] sm:$0xff] %v842
        %1037 = vst [vmem:[%s287 + $0x68] sm:$0xff] %v843
        %1038 = vst [vmem:[%s287 + $0x70] sm:$0xff] %v844
        %1039 = vst [vmem:[%s287 + $0x78] sm:$0xff] %v845
        %1040 = vst [vmem:[%s287 + $0x80] sm:$0xff] %v846
        %1041 = vst [vmem:[%s287 + $0x88] sm:$0xff] %v847
        %1042 = vst [vmem:[%s287 + $0x90] sm:$0xff] %v848
        %1043 = vst [vmem:[%s287 + $0x98] sm:$0xff] %v849
        %1044 = vst [vmem:[%s287 + $0xa0] sm:$0xff] %v850
        %1045 = vst [vmem:[%s287 + $0xa8] sm:$0xff] %v851
        %1046 = vst [vmem:[%s287 + $0xb0] sm:$0xff] %v852
        %1047 = vst [vmem:[%s287 + $0xb8] sm:$0xff] %v853
        %1048 = vst [vmem:[%s287 + $0xc0] sm:$0xff] %v854
        %1049 = vst [vmem:[%s287 + $0xc8] sm:$0xff] %v855
        %1050 = vst [vmem:[%s287 + $0xd0] sm:$0xff] %v856
        %1051 = vst [vmem:[%s287 + $0xd8] sm:$0xff] %v857
        %1052 = vst [vmem:[%s287 + $0xe0] sm:$0xff] %v858
        %1053 = vst [vmem:[%s287 + $0xe8] sm:$0xff] %v859
        %1054 = vst [vmem:[%s287 + $0xf0] sm:$0xff] %v860
        %1055 = vst [vmem:[%s287 + $0xf8] sm:$0xff] %v861
        %s1056 = smul.u32 16, %s24
        %p1057 = scmp.lt.s32.totalorder %s25, 3
        %s1058 = scalar_select %p1057, %s25, 3
        %p1059 = scmp.lt.s32.totalorder %s1056, 31
        %s1060 = scalar_select %p1059, %s1056, 31
        %s1061 = smul.addr %s1058, 32
        %s1062 = sadd.s32 %s1060, %s1061
        %s1063 = smul.addr %s1062, 8
        %s1064 = scalar_lea.vmem %s4, %s1063
        %s1065 = sand.u32 %s171, 1
        %s1066 = scalar_lea.sflag [#allocation3], %s1065
        %s1067 = sand.u32 %s171, 1
        %s1068 = smul.addr %s1067, 256
        %s1069 = scalar_lea.vmem [#allocation2], %s1068
        // Predicated region
        $region37: #{pre_gat_conv_wo.1} parent=35 // pred_check
          %p1070 = pneg %p153
        $region38: #{pre_gat_conv_wo.1} parent=35 // pred_check_branch
          %1072 = sbr.rel (%p1070) target = $region40
        $region39: #{pre_gat_conv_wo.1} parent=35 // pred_region
          %s1073 = smul.u32 16, %s24
        $region40: #{pre_gat_conv_wo.1} parent=35 // pred_fallthru
          _
        // Predicated region
        $region41: #{pre_gat_conv_wo.1} parent=35 // pred_check
          %p1074 = pneg %p181
        $region42: #{pre_gat_conv_wo.1} parent=35 // pred_check_branch
          %1076 = sbr.rel (%p1074) target = $region44
        $region43: #{pre_gat_conv_wo.1} parent=35 // pred_region
          %s1077 = smul.u32 16, %s24
          %s1079 = ssub.s32 4096, 4096
          %1080 = vsyncadd %s1066, %s1079
          %s1081 = smul.addr %s1077, 2
          %s1082 = smul.addr %s25, 64
          %s1083 = sadd.s32 %s1081, %s1082
          %s1084 = smul.addr %s1083, 128
          %s1085 = scalar_lea.hbm %s5, %s1084
          %s1086 = sshll.u32 %s1069, 4
          %s1087 = int_to_ptr.vmem [resolvable:$true] %s1086
          %1092 = dma.vmem_to_hbm [thread:$0]  %s1087, 4096, %s1085, %s1066, 256, 256, 16
        $region44: #{pre_gat_conv_wo.1} parent=35 // pred_fallthru
          _
      $region36: #{pre_gat_conv_wo.1} parent=5 // pred_fallthru
        _
      %p1093 = scmp.le.s32.totalorder 2, %s15
      // Predicated region
      $region45: #{pre_gat_conv_wo.1} parent=5 // pred_check
        %p1094 = pneg %p1093
      $region46: #{pre_gat_conv_wo.1} parent=5 // pred_check_branch
        %1096 = sbr.rel (%p1094) target = $region48
      $region47: #{pre_gat_conv_wo.1} parent=5 // pred_region
        %s1097 = ssub.s32 %s15, 2
        // Predicated region
        $region49: #{pre_gat_conv_wo.1} parent=47 // pred_check
          %p1098 = pneg %p159
        $region50: #{pre_gat_conv_wo.1} parent=47 // pred_check_branch
          %1100 = sbr.rel (%p1098) target = $region52
        $region51: #{pre_gat_conv_wo.1} parent=47 // pred_region
          %s1101 = smul.u32 16, %s26
          %p1102 = scmp.lt.s32.totalorder %s27, 3
          %s1103 = scalar_select %p1102, %s27, 3
          %p1104 = scmp.lt.s32.totalorder %s1101, 31
          %s1105 = scalar_select %p1104, %s1101, 31
          %s1106 = smul.addr %s1103, 32
          %s1107 = sadd.s32 %s1105, %s1106
          %s1108 = smul.addr %s1107, 8
          %s1109 = scalar_lea.vmem %s4, %s1108
        $region52: #{pre_gat_conv_wo.1} parent=47 // pred_fallthru
          _
        // Predicated region
        $region53: #{pre_gat_conv_wo.1} parent=47 // pred_check
          %p1110 = pneg %p187
        $region54: #{pre_gat_conv_wo.1} parent=47 // pred_check_branch
          %1112 = sbr.rel (%p1110) target = $region56
        $region55: #{pre_gat_conv_wo.1} parent=47 // pred_region
          %s1113 = sand.u32 %s172, 1
          %s1114 = scalar_lea.sflag [#allocation3], %s1113
          %s1115 = sand.u32 %s172, 1
          %s1116 = smul.addr %s1115, 256
          %s1117 = scalar_lea.vmem [#allocation2], %s1116
          %1118 = dma.done %s1114, 4096
        $region56: #{pre_gat_conv_wo.1} parent=47 // pred_fallthru
          _
      $region48: #{pre_gat_conv_wo.1} parent=5 // pred_fallthru
        _
    $region6: #{pre_gat_conv_wo.1} parent=1 // loop_footer
      %s19 = sadd.s32 1, %s15
    $region7: #{pre_gat_conv_wo.1} parent=1 // loop_footer_branch
      %14 = sbr.rel target = $region3
    $region8: #{pre_gat_conv_wo.1} parent=1 // loop_exit
      _
    %1119 = vsyncpa [#allocation3], 1
    %s1120 = scalar_lea.sflag [#allocation3], 1
    %1121 = vsyncpa %s1120, 1

</llo_original>
